<compile_context>
chip_gen: v5e
topology: v5e:2x2
jax: 0.10.0
libtpu: 0.0.40
codegen_flags: <defaults>
</compile_context>

<pallas_src>
import jax
import jax.numpy as jnp
from jax.experimental import pallas as pl
from jax.experimental.pallas import tpu as pltpu

STATE_DIM = 4
ACTION_DIM = 4
HIDDEN = 32          # net_arch = [32, 32]
OUT_LANES = 128      # lane-dense output slab width

# ---- packed weight slab layout (rows x lanes), every matrix 128-lane aligned
W_ROWS = 48
W_LANES = 768
P0, P1, P2, P3, P4, P5 = 0, 128, 256, 384, 512, 640   # lane panels
ROW_W1U  = HIDDEN                         # 32 : wu  = [hw1 | fw1u | lw1u]
ROW_W1XH = HIDDEN + ACTION_DIM            # 36 : wxh = [fw1x | lw1x]
ROW_B1   = 40                             # [hb1 | fb1 | lb1]
ROW_HB2  = 41                             # hb2
ROW_B2   = 42                             # [fb2 | lb2]
ROW_HB3  = 43                             # hb3
ROW_FB3  = 44                             # fb3
ROW_LB3  = 45                             # lb3
ROW_LW3R = 46                             # lw3 as a row


# --------------------------------------------------------------------------- #
# Kernel
# --------------------------------------------------------------------------- #
def ssg_dynamics_kernel(xu_ref, w_ref, out_ref):
    S, A, H = STATE_DIM, ACTION_DIM, HIDDEN
    B = xu_ref.shape[0]

    x = xu_ref[:, 0:S]                   # [B, S]
    u = xu_ref[:, S:S + A]               # [B, A]

    # -- 128-lane aligned views into the packed weight slab ------------------
    hw2   = w_ref[0:H, P0:P0 + H]                 # [H, H]
    w2f   = w_ref[0:H, P1:P1 + 2 * H]             # [H, 2H] = [fw2 | lw2]
    w3f   = w_ref[0:H, P2:P2 + S + 1]             # [H, S+1] = [fw3 | lw3]
    lw2t  = w_ref[0:H, P3:P3 + H]                 # [H, H]  (lw2 transposed)
    lw1xt = w_ref[0:H, P4:P4 + S]                 # [H, S]  (lw1x transposed)
    hw3   = w_ref[0:H, P5:P5 + S]                 # [H, S]
    wu    = w_ref[ROW_W1U:ROW_W1U + A, 0:3 * H]           # [A, 3H]
    wxh   = w_ref[ROW_W1XH:ROW_W1XH + S, P1:P1 + 2 * H]   # [S, 2H]

    b1all = w_ref[ROW_B1:ROW_B1 + 1, 0:3 * H]     # [1, 3H] = [hb1 | fb1 | lb1]
    hb2   = w_ref[ROW_HB2:ROW_HB2 + 1, 0:H]
    b2all = w_ref[ROW_B2:ROW_B2 + 1, 0:2 * H]     # [1, 2H] = [fb2 | lb2]
    hb3   = w_ref[ROW_HB3:ROW_HB3 + 1, 0:S]
    fb3   = w_ref[ROW_FB3:ROW_FB3 + 1, 0:S]
    lb3   = w_ref[ROW_LB3:ROW_LB3 + 1, 0:1]
    lw3r  = w_ref[ROW_LW3R:ROW_LW3R + 1, 0:H]     # [1, H]

    # ---- fused first-layer u-contributions (1 matmul feeds all 3 MLPs) -----
    zu = jnp.dot(u, wu, preferred_element_type=jnp.float32) + b1all   # [B, 3H]
    h_z1 = zu[:, 0:H]          # h-MLP layer-1 pre-activation (complete)
    f_zu = zu[:, H:2 * H]      # u-part (+ fb1) of f-MLP layer 1
    l_zu = zu[:, 2 * H:3 * H]  # u-part (+ lb1) of Lyapunov layer 1

    # ---- h = MLP_h(u) -------------------------------------------------------
    a = jnp.maximum(h_z1, 0.0)
    a = jnp.maximum(jnp.dot(a, hw2, preferred_element_type=jnp.float32) + hb2, 0.0)
    h = jnp.dot(a, hw3, preferred_element_type=jnp.float32) + hb3     # [B, S]

    # ---- first-layer x/h contributions (x|h stacked on the batch axis) -----
    xh = jnp.concatenate([x, h], axis=0)                              # [2B, S]
    zxh = jnp.dot(xh, wxh, preferred_element_type=jnp.float32)        # [2B, 2H]

    z1_f = zxh[:, 0:H] + jnp.concatenate([f_zu, f_zu], axis=0)        # [2B, H]
    z1_l = zxh[0:B, H:2 * H] + l_zu                                   # [B, H]
    a1_f = jnp.maximum(z1_f, 0.0)
    a1_l = jnp.maximum(z1_l, 0.0)

    # ---- fused layer-2: f-MLP (both branches) + Lyapunov in one matmul -----
    a1 = jnp.concatenate([a1_f, a1_l], axis=0)                        # [3B, H]
    z2 = jnp.dot(a1, w2f, preferred_element_type=jnp.float32) + b2all # [3B, 2H]
    a2 = jnp.maximum(z2, 0.0)
    z2_l = z2[2 * B:3 * B, H:2 * H]                                   # [B, H] (pre-ReLU)

    # ---- fused layer-3: [fw3 | lw3] -----------------------------------------
    a2s = jnp.concatenate([a2[0:2 * B, 0:H], a2[2 * B:3 * B, H:2 * H]], axis=0)  # [3B, H]
    z3 = jnp.dot(a2s, w3f, preferred_element_type=jnp.float32)        # [3B, S+1]
    out_f = z3[0:2 * B, 0:S] + fb3                                    # [2B, S]
    f_hat = out_f[0:B] - out_f[B:2 * B]                               # [B, S]
    V = z3[2 * B:3 * B, S:S + 1] + lb3                                # [B, 1]

    # ---- dV/dx via ReLU-MLP backprop (== th.autograd.grad(V.sum(), x)) -----
    g2 = jnp.where(z2_l > 0.0, jnp.broadcast_to(lw3r, (B, H)), 0.0)   # [B, H]
    g1 = jnp.where(z1_l > 0.0,
                   jnp.dot(g2, lw2t, preferred_element_type=jnp.float32),
                   0.0)                                               # [B, H]
    grad_v = jnp.dot(g1, lw1xt, preferred_element_type=jnp.float32)   # [B, S]

    # ---- stabilizing correction ---------------------------------------------
    w_pen = 0.1 * jnp.sum((x - h) ** 2, axis=1, keepdims=True)        # [B, 1]
    num = jnp.sum(grad_v * f_hat, axis=1, keepdims=True) + w_pen
    den = jnp.sum(grad_v * grad_v, axis=1, keepdims=True) + 1e-4
    inv_den = pl.reciprocal(den, approx=True)
    inv_den = inv_den * (2.0 - den * inv_den)     # one Newton refinement step
    criterion = jnp.maximum(num * inv_den, 0.0)
    f = f_hat - criterion * grad_v                                    # [B, S]

    # ---- single lane-dense output slab: [ f | h | V | 0-pad ] ---------------
    pad = jnp.zeros((B, OUT_LANES - 2 * S - 1), jnp.float32)
    out_ref[...] = jnp.concatenate([f, h, V, pad], axis=1)


# --------------------------------------------------------------------------- #
# Parameter packing: ONE slab, computed once per parameter update (not per call)
# --------------------------------------------------------------------------- #
def pack_params(params):
    S, A, H = STATE_DIM, ACTION_DIM, HIDDEN
    (hw1, hb1), (hw2, hb2), (hw3, hb3) = params["h"]
    (fw1, fb1), (fw2, fb2), (fw3, fb3) = params["f"]
    (lw1, lb1), (lw2, lb2), (lw3, lb3) = params["l"]

    fw1x, fw1u = fw1[:S], fw1[S:]
    lw1x, lw1u = lw1[:S], lw1[S:]

    W = jnp.zeros((W_ROWS, W_LANES), jnp.float32)
    # H-row band, one 128-lane panel per MXU operand
    W = W.at[0:H, P0:P0 + H].set(hw2)
    W = W.at[0:H, P1:P1 + 2 * H].set(jnp.concatenate([fw2, lw2], axis=1))
    W = W.at[0:H, P2:P2 + S + 1].set(jnp.concatenate([fw3, lw3], axis=1))
    W = W.at[0:H, P3:P3 + H].set(lw2.T)
    W = W.at[0:H, P4:P4 + S].set(lw1x.T)
    W = W.at[0:H, P5:P5 + S].set(hw3)
    # first-layer band
    W = W.at[ROW_W1U:ROW_W1U + A, 0:3 * H].set(
        jnp.concatenate([hw1, fw1u, lw1u], axis=1))
    W = W.at[ROW_W1XH:ROW_W1XH + S, P1:P1 + 2 * H].set(
        jnp.concatenate([fw1x, lw1x], axis=1))
    # bias band
    W = W.at[ROW_B1, 0:3 * H].set(jnp.concatenate([hb1, fb1, lb1], axis=1)[0])
    W = W.at[ROW_HB2, 0:H].set(hb2[0])
    W = W.at[ROW_B2, 0:2 * H].set(jnp.concatenate([fb2, lb2], axis=1)[0])
    W = W.at[ROW_HB3, 0:S].set(hb3[0])
    W = W.at[ROW_FB3, 0:S].set(fb3[0])
    W = W.at[ROW_LB3, 0:1].set(lb3[0])
    W = W.at[ROW_LW3R, 0:H].set(lw3[:, 0])
    return W


# --------------------------------------------------------------------------- #
# Wrapper: 2 input DMAs, grid over batch tiles, weights VMEM-resident
# --------------------------------------------------------------------------- #
def ssg_dynamics_fw(x, u, w_packed, tile_b=32):
    B, S = x.shape
    A = u.shape[1]

    xu = jnp.concatenate([x, u], axis=1)                 # [B, S+A]
    Bp = ((B + tile_b - 1) // tile_b) * tile_b
    if Bp != B:
        xu = jnp.pad(xu, ((0, Bp - B), (0, 0)))
    num_tiles = Bp // tile_b

    macs_per_row = 9824        # sum over all matmuls of (rows-per-batch-row)*K*N
    cost = pl.CostEstimate(
        flops=int(2 * Bp * macs_per_row),
        transcendentals=int(Bp),
        bytes_accessed=int(4 * (Bp * (S + A) + W_ROWS * W_LANES + Bp * OUT_LANES)),
    )

    out = pl.pallas_call(
        ssg_dynamics_kernel,
        grid=(num_tiles,),
        in_specs=[
            pl.BlockSpec((tile_b, S + A), lambda i: (i, 0)),
            # constant index_map -> weight slab DMA'd once, VMEM-resident
            pl.BlockSpec((W_ROWS, W_LANES), lambda i: (0, 0)),
        ],
        out_specs=pl.BlockSpec((tile_b, OUT_LANES), lambda i: (i, 0)),
        out_shape=jax.ShapeDtypeStruct((Bp, OUT_LANES), jnp.float32),
        compiler_params=pltpu.CompilerParams(dimension_semantics=("parallel",)),
        cost_estimate=cost,
    )(xu, w_packed)

    f = out[:B, 0:S]
    h = out[:B, S:2 * S]
    V = out[:B, 2 * S:2 * S + 1]
    # match PyTorch output shapes: f -> [B, S, 1], h -> [B, S], V -> [B, 1]
    return f[..., None], h, V


# --------------------------------------------------------------------------- #
# Deterministic parameter init (PyTorch nn.Linear-style uniform)
# --------------------------------------------------------------------------- #
def init_linear(key, fan_in, fan_out):
    kw, kb = jax.random.split(key)
    bound = 1.0 / jnp.sqrt(jnp.float32(fan_in))
    w = jax.random.uniform(kw, (fan_in, fan_out), jnp.float32, -bound, bound)
    b = jax.random.uniform(kb, (1, fan_out), jnp.float32, -bound, bound)
    return w, b


def init_mlp(key, in_dim, out_dim, hidden):
    k1, k2, k3 = jax.random.split(key, 3)
    return [init_linear(k1, in_dim, hidden),
            init_linear(k2, hidden, hidden),
            init_linear(k3, hidden, out_dim)]


# --------------------------------------------------------------------------- #
# Pure-JAX reference (uses jax.grad outside the kernel, only for verification)
# --------------------------------------------------------------------------- #
def _mlp(layers, x):
    (w1, b1), (w2, b2), (w3, b3) = layers
    a = jax.nn.relu(x @ w1 + b1)
    a = jax.nn.relu(a @ w2 + b2)
    return a @ w3 + b3


def reference(x, u, params):
    h = _mlp(params["h"], u)
    hu = jnp.concatenate([h, u], axis=1)
    xu = jnp.concatenate([x, u], axis=1)
    f_hat = _mlp(params["f"], xu) - _mlp(params["f"], hu)
    V = _mlp(params["l"], xu)
    grad_V = jax.grad(lambda xx: _mlp(params["l"], jnp.concatenate([xx, u], 1)).sum())(x)
    W = 0.1 * jnp.sum((x - h) ** 2, axis=1, keepdims=True)
    num = jnp.sum(grad_V * f_hat, axis=1, keepdims=True) + W
    den = jnp.sum(grad_V ** 2, axis=1, keepdims=True) + 1e-4
    crit = jax.nn.relu(num / den)
    f = f_hat - crit * grad_V
    return f[..., None], h, V


# --------------------------------------------------------------------------- #
if __name__ == "__main__":
    key = jax.random.PRNGKey(0)
    kx, ku, kh, kf, kl = jax.random.split(key, 5)

    TOTAL_B = 64                                  # 2 tiles of 32 rows
    x = jax.random.normal(kx, (TOTAL_B, STATE_DIM), jnp.float32)
    u = jax.random.normal(ku, (TOTAL_B, ACTION_DIM), jnp.float32)

    params = {
        "h": init_mlp(kh, ACTION_DIM, STATE_DIM, HIDDEN),
        "f": init_mlp(kf, STATE_DIM + ACTION_DIM, STATE_DIM, HIDDEN),
        "l": init_mlp(kl, STATE_DIM + ACTION_DIM, 1, HIDDEN),
    }

    # packing is hoisted out of the hot path (once per parameter update)
    w_packed = jax.block_until_ready(pack_params(params))

    fwd = jax.jit(ssg_dynamics_fw, static_argnames=("tile_b",))
    f, h, V = fwd(x, u, w_packed)
    jax.block_until_ready((f, h, V))

    f_r, h_r, V_r = reference(x, u, params)
    assert jnp.allclose(f, f_r, atol=1e-4, rtol=1e-4)
    assert jnp.allclose(h, h_r, atol=1e-4, rtol=1e-4)
    assert jnp.allclose(V, V_r, atol=1e-4, rtol=1e-4)

    print("KERNEL_OK")
</pallas_src>

<mosaic_0001>
module attributes {stable_mosaic.version = 11 : i64} {
  func.func @ssg_dynamics_kernel(%arg0: i32, %arg1: memref<32x8xf32, #tpu.memory_space<vmem>>, %arg2: memref<48x768xf32, #tpu.memory_space<vmem>>, %arg3: memref<32x128xf32, #tpu.memory_space<vmem>>) attributes {dimension_semantics = [#tpu.dimension_semantics<parallel>], iteration_bounds = array<i64: 2>, scalar_prefetch = 0 : i64, scratch_operands = 0 : i64, tpu.core_type = #tpu.core_type<tc>, window_params = [{transform_indices = @transform_0, window_bounds = array<i64: 32, 8>}, {pipeline_mode = #tpu.pipeline_mode<synchronous>, transform_indices = @transform_1, window_bounds = array<i64: 48, 768>}, {transform_indices = @transform_2, window_bounds = array<i64: 32, 128>}]} {
    %c0 = arith.constant 0 : index
    %c0_0 = arith.constant 0 : index
    %0 = vector.load %arg1[%c0, %c0_0] : memref<32x8xf32, #tpu.memory_space<vmem>>, vector<32x4xf32>
    %c0_1 = arith.constant 0 : index
    %c4 = arith.constant 4 : index
    %1 = vector.load %arg1[%c0_1, %c4] : memref<32x8xf32, #tpu.memory_space<vmem>>, vector<32x4xf32>
    %c0_2 = arith.constant 0 : index
    %c0_3 = arith.constant 0 : index
    %2 = vector.load %arg2[%c0_2, %c0_3] : memref<48x768xf32, #tpu.memory_space<vmem>>, vector<32x32xf32>
    %c0_4 = arith.constant 0 : index
    %c128 = arith.constant 128 : index
    %3 = vector.load %arg2[%c0_4, %c128] : memref<48x768xf32, #tpu.memory_space<vmem>>, vector<32x64xf32>
    %c0_5 = arith.constant 0 : index
    %c256 = arith.constant 256 : index
    %4 = vector.load %arg2[%c0_5, %c256] : memref<48x768xf32, #tpu.memory_space<vmem>>, vector<32x5xf32>
    %c0_6 = arith.constant 0 : index
    %c384 = arith.constant 384 : index
    %5 = vector.load %arg2[%c0_6, %c384] : memref<48x768xf32, #tpu.memory_space<vmem>>, vector<32x32xf32>
    %c0_7 = arith.constant 0 : index
    %c512 = arith.constant 512 : index
    %6 = vector.load %arg2[%c0_7, %c512] : memref<48x768xf32, #tpu.memory_space<vmem>>, vector<32x4xf32>
    %c0_8 = arith.constant 0 : index
    %c640 = arith.constant 640 : index
    %7 = vector.load %arg2[%c0_8, %c640] : memref<48x768xf32, #tpu.memory_space<vmem>>, vector<32x4xf32>
    %c32 = arith.constant 32 : index
    %c0_9 = arith.constant 0 : index
    %8 = vector.load %arg2[%c32, %c0_9] : memref<48x768xf32, #tpu.memory_space<vmem>>, vector<4x96xf32>
    %c36 = arith.constant 36 : index
    %c128_10 = arith.constant 128 : index
    %9 = vector.load %arg2[%c36, %c128_10] : memref<48x768xf32, #tpu.memory_space<vmem>>, vector<4x64xf32>
    %c40 = arith.constant 40 : index
    %c0_11 = arith.constant 0 : index
    %10 = vector.load %arg2[%c40, %c0_11] : memref<48x768xf32, #tpu.memory_space<vmem>>, vector<1x96xf32>
    %c41 = arith.constant 41 : index
    %c0_12 = arith.constant 0 : index
    %11 = vector.load %arg2[%c41, %c0_12] : memref<48x768xf32, #tpu.memory_space<vmem>>, vector<1x32xf32>
    %c42 = arith.constant 42 : index
    %c0_13 = arith.constant 0 : index
    %12 = vector.load %arg2[%c42, %c0_13] : memref<48x768xf32, #tpu.memory_space<vmem>>, vector<1x64xf32>
    %c43 = arith.constant 43 : index
    %c0_14 = arith.constant 0 : index
    %13 = vector.load %arg2[%c43, %c0_14] : memref<48x768xf32, #tpu.memory_space<vmem>>, vector<1x4xf32>
    %c44 = arith.constant 44 : index
    %c0_15 = arith.constant 0 : index
    %14 = vector.load %arg2[%c44, %c0_15] : memref<48x768xf32, #tpu.memory_space<vmem>>, vector<1x4xf32>
    %c45 = arith.constant 45 : index
    %c0_16 = arith.constant 0 : index
    %15 = vector.load %arg2[%c45, %c0_16] : memref<48x768xf32, #tpu.memory_space<vmem>>, vector<1x1xf32>
    %c46 = arith.constant 46 : index
    %c0_17 = arith.constant 0 : index
    %16 = vector.load %arg2[%c46, %c0_17] : memref<48x768xf32, #tpu.memory_space<vmem>>, vector<1x32xf32>
    %cst = arith.constant dense<0.000000e+00> : vector<32x96xf32>
    %17 = tpu.matmul %1, %8, %cst {dimension_numbers = #tpu.dot_dimension_numbers<[1], [0], [0], [1], [0, 0, 1, 1], [], []>} : vector<32x4xf32>, vector<4x96xf32>, vector<32x96xf32> -> vector<32x96xf32>
    %18 = vector.broadcast %10 : vector<1x96xf32> to vector<32x96xf32>
    %19 = arith.addf %17, %18 : vector<32x96xf32>
    %20 = vector.extract_strided_slice %19 {offsets = [0, 0], sizes = [32, 32], strides = [1, 1]} : vector<32x96xf32> to vector<32x32xf32>
    %21 = vector.extract_strided_slice %19 {offsets = [0, 32], sizes = [32, 32], strides = [1, 1]} : vector<32x96xf32> to vector<32x32xf32>
    %22 = vector.extract_strided_slice %19 {offsets = [0, 64], sizes = [32, 32], strides = [1, 1]} : vector<32x96xf32> to vector<32x32xf32>
    %cst_18 = arith.constant 0.000000e+00 : f32
    %23 = vector.broadcast %cst_18 : f32 to vector<32x32xf32>
    %24 = arith.maximumf %20, %23 : vector<32x32xf32>
    %cst_19 = arith.constant dense<0.000000e+00> : vector<32x32xf32>
    %25 = tpu.matmul %24, %2, %cst_19 {dimension_numbers = #tpu.dot_dimension_numbers<[1], [0], [0], [1], [0, 0, 1, 1], [], []>} : vector<32x32xf32>, vector<32x32xf32>, vector<32x32xf32> -> vector<32x32xf32>
    %26 = vector.broadcast %11 : vector<1x32xf32> to vector<32x32xf32>
    %27 = arith.addf %25, %26 : vector<32x32xf32>
    %cst_20 = arith.constant 0.000000e+00 : f32
    %28 = vector.broadcast %cst_20 : f32 to vector<32x32xf32>
    %29 = arith.maximumf %27, %28 : vector<32x32xf32>
    %cst_21 = arith.constant dense<0.000000e+00> : vector<32x4xf32>
    %30 = tpu.matmul %29, %7, %cst_21 {dimension_numbers = #tpu.dot_dimension_numbers<[1], [0], [0], [1], [0, 0, 1, 1], [], []>} : vector<32x32xf32>, vector<32x4xf32>, vector<32x4xf32> -> vector<32x4xf32>
    %31 = vector.broadcast %13 : vector<1x4xf32> to vector<32x4xf32>
    %32 = arith.addf %30, %31 : vector<32x4xf32>
    %33 = tpu.concatenate %0, %32 in 0 : vector<32x4xf32>, vector<32x4xf32> -> vector<64x4xf32>
    %cst_22 = arith.constant dense<0.000000e+00> : vector<64x64xf32>
    %34 = tpu.matmul %33, %9, %cst_22 {dimension_numbers = #tpu.dot_dimension_numbers<[1], [0], [0], [1], [0, 0, 1, 1], [], []>} : vector<64x4xf32>, vector<4x64xf32>, vector<64x64xf32> -> vector<64x64xf32>
    %35 = vector.extract_strided_slice %34 {offsets = [0, 0], sizes = [64, 32], strides = [1, 1]} : vector<64x64xf32> to vector<64x32xf32>
    %36 = tpu.concatenate %21, %21 in 0 : vector<32x32xf32>, vector<32x32xf32> -> vector<64x32xf32>
    %37 = arith.addf %35, %36 : vector<64x32xf32>
    %38 = vector.extract_strided_slice %34 {offsets = [0, 32], sizes = [32, 32], strides = [1, 1]} : vector<64x64xf32> to vector<32x32xf32>
    %39 = arith.addf %38, %22 : vector<32x32xf32>
    %cst_23 = arith.constant 0.000000e+00 : f32
    %40 = vector.broadcast %cst_23 : f32 to vector<64x32xf32>
    %41 = arith.maximumf %37, %40 : vector<64x32xf32>
    %cst_24 = arith.constant 0.000000e+00 : f32
    %42 = vector.broadcast %cst_24 : f32 to vector<32x32xf32>
    %43 = arith.maximumf %39, %42 : vector<32x32xf32>
    %44 = tpu.concatenate %41, %43 in 0 : vector<64x32xf32>, vector<32x32xf32> -> vector<96x32xf32>
    %cst_25 = arith.constant dense<0.000000e+00> : vector<96x64xf32>
    %45 = tpu.matmul %44, %3, %cst_25 {dimension_numbers = #tpu.dot_dimension_numbers<[1], [0], [0], [1], [0, 0, 1, 1], [], []>} : vector<96x32xf32>, vector<32x64xf32>, vector<96x64xf32> -> vector<96x64xf32>
    %46 = vector.broadcast %12 : vector<1x64xf32> to vector<96x64xf32>
    %47 = arith.addf %45, %46 : vector<96x64xf32>
    %cst_26 = arith.constant 0.000000e+00 : f32
    %48 = vector.broadcast %cst_26 : f32 to vector<96x64xf32>
    %49 = arith.maximumf %47, %48 : vector<96x64xf32>
    %50 = vector.extract_strided_slice %47 {offsets = [64, 32], sizes = [32, 32], strides = [1, 1]} : vector<96x64xf32> to vector<32x32xf32>
    %51 = vector.extract_strided_slice %49 {offsets = [0, 0], sizes = [64, 32], strides = [1, 1]} : vector<96x64xf32> to vector<64x32xf32>
    %52 = vector.extract_strided_slice %49 {offsets = [64, 32], sizes = [32, 32], strides = [1, 1]} : vector<96x64xf32> to vector<32x32xf32>
    %53 = tpu.concatenate %51, %52 in 0 : vector<64x32xf32>, vector<32x32xf32> -> vector<96x32xf32>
    %cst_27 = arith.constant dense<0.000000e+00> : vector<96x5xf32>
    %54 = tpu.matmul %53, %4, %cst_27 {dimension_numbers = #tpu.dot_dimension_numbers<[1], [0], [0], [1], [0, 0, 1, 1], [], []>} : vector<96x32xf32>, vector<32x5xf32>, vector<96x5xf32> -> vector<96x5xf32>
    %55 = vector.extract_strided_slice %54 {offsets = [0, 0], sizes = [64, 4], strides = [1, 1]} : vector<96x5xf32> to vector<64x4xf32>
    %56 = vector.broadcast %14 : vector<1x4xf32> to vector<64x4xf32>
    %57 = arith.addf %55, %56 : vector<64x4xf32>
    %58 = vector.extract_strided_slice %57 {offsets = [0, 0], sizes = [32, 4], strides = [1, 1]} : vector<64x4xf32> to vector<32x4xf32>
    %59 = vector.extract_strided_slice %57 {offsets = [32, 0], sizes = [32, 4], strides = [1, 1]} : vector<64x4xf32> to vector<32x4xf32>
    %60 = arith.subf %58, %59 : vector<32x4xf32>
    %61 = vector.extract_strided_slice %54 {offsets = [64, 4], sizes = [32, 1], strides = [1, 1]} : vector<96x5xf32> to vector<32x1xf32>
    %62 = vector.broadcast %15 : vector<1x1xf32> to vector<32x1xf32>
    %63 = arith.addf %61, %62 : vector<32x1xf32>
    %cst_28 = arith.constant 0.000000e+00 : f32
    %64 = vector.broadcast %cst_28 : f32 to vector<32x32xf32>
    %65 = arith.cmpf ogt, %50, %64 : vector<32x32xf32>
    %66 = vector.shape_cast %16 : vector<1x32xf32> to vector<1x32xf32>
    %67 = vector.broadcast %66 : vector<1x32xf32> to vector<32x32xf32>
    %cst_29 = arith.constant 0.000000e+00 : f32
    %68 = vector.broadcast %cst_29 : f32 to vector<32x32xf32>
    %69 = arith.select %65, %67, %68 : vector<32x32xi1>, vector<32x32xf32>
    %cst_30 = arith.constant 0.000000e+00 : f32
    %70 = vector.broadcast %cst_30 : f32 to vector<32x32xf32>
    %71 = arith.cmpf ogt, %39, %70 : vector<32x32xf32>
    %cst_31 = arith.constant dense<0.000000e+00> : vector<32x32xf32>
    %72 = tpu.matmul %69, %5, %cst_31 {dimension_numbers = #tpu.dot_dimension_numbers<[1], [0], [0], [1], [0, 0, 1, 1], [], []>} : vector<32x32xf32>, vector<32x32xf32>, vector<32x32xf32> -> vector<32x32xf32>
    %cst_32 = arith.constant 0.000000e+00 : f32
    %73 = vector.broadcast %cst_32 : f32 to vector<32x32xf32>
    %74 = arith.select %71, %72, %73 : vector<32x32xi1>, vector<32x32xf32>
    %cst_33 = arith.constant dense<0.000000e+00> : vector<32x4xf32>
    %75 = tpu.matmul %74, %6, %cst_33 {dimension_numbers = #tpu.dot_dimension_numbers<[1], [0], [0], [1], [0, 0, 1, 1], [], []>} : vector<32x32xf32>, vector<32x4xf32>, vector<32x4xf32> -> vector<32x4xf32>
    %76 = arith.subf %0, %32 : vector<32x4xf32>
    %77 = arith.mulf %76, %76 : vector<32x4xf32>
    %cst_34 = arith.constant dense<0.000000e+00> : vector<32xf32>
    %78 = vector.multi_reduction <add>, %77, %cst_34 [1] : vector<32x4xf32> to vector<32xf32>
    %79 = vector.shape_cast %78 : vector<32xf32> to vector<32x1xf32>
    %cst_35 = arith.constant 1.000000e-01 : f32
    %80 = vector.broadcast %cst_35 : f32 to vector<32x1xf32>
    %81 = arith.mulf %80, %79 : vector<32x1xf32>
    %82 = arith.mulf %75, %60 : vector<32x4xf32>
    %cst_36 = arith.constant dense<0.000000e+00> : vector<32xf32>
    %83 = vector.multi_reduction <add>, %82, %cst_36 [1] : vector<32x4xf32> to vector<32xf32>
    %84 = vector.shape_cast %83 : vector<32xf32> to vector<32x1xf32>
    %85 = arith.addf %84, %81 : vector<32x1xf32>
    %86 = arith.mulf %75, %75 : vector<32x4xf32>
    %cst_37 = arith.constant dense<0.000000e+00> : vector<32xf32>
    %87 = vector.multi_reduction <add>, %86, %cst_37 [1] : vector<32x4xf32> to vector<32xf32>
    %88 = vector.shape_cast %87 : vector<32xf32> to vector<32x1xf32>
    %cst_38 = arith.constant 9.99999974E-5 : f32
    %89 = vector.broadcast %cst_38 : f32 to vector<32x1xf32>
    %90 = arith.addf %88, %89 : vector<32x1xf32>
    %91 = tpu.reciprocal %90 {approx = true} : vector<32x1xf32> -> vector<32x1xf32>
    %92 = arith.mulf %90, %91 : vector<32x1xf32>
    %cst_39 = arith.constant 2.000000e+00 : f32
    %93 = vector.broadcast %cst_39 : f32 to vector<32x1xf32>
    %94 = arith.subf %93, %92 : vector<32x1xf32>
    %95 = arith.mulf %91, %94 : vector<32x1xf32>
    %96 = arith.mulf %85, %95 : vector<32x1xf32>
    %cst_40 = arith.constant 0.000000e+00 : f32
    %97 = vector.broadcast %cst_40 : f32 to vector<32x1xf32>
    %98 = arith.maximumf %96, %97 : vector<32x1xf32>
    %99 = vector.broadcast %98 : vector<32x1xf32> to vector<32x4xf32>
    %100 = arith.mulf %99, %75 : vector<32x4xf32>
    %101 = arith.subf %60, %100 : vector<32x4xf32>
    %cst_41 = arith.constant 0.000000e+00 : f32
    %102 = vector.broadcast %cst_41 : f32 to vector<32x119xf32>
    %103 = tpu.concatenate %101, %32, %63, %102 in 1 : vector<32x4xf32>, vector<32x4xf32>, vector<32x1xf32>, vector<32x119xf32> -> vector<32x128xf32>
    %c0_42 = arith.constant 0 : index
    %c0_43 = arith.constant 0 : index
    %104 = vector.load %arg3[%c0_42, %c0_43] : memref<32x128xf32, #tpu.memory_space<vmem>>, vector<32x128xf32>
    tpu.vector_store %arg3[%c0_42, %c0_43], %103 {strides = array<i32>} : memref<32x128xf32, #tpu.memory_space<vmem>>, vector<32x128xf32>,
    return
  }
  func.func @transform_0(%arg0: i32) -> (i32, i32) {
    %c0_i32 = arith.constant 0 : i32
    %c0_i32_0 = arith.constant 0 : i32
    return %arg0, %c0_i32 : i32, i32
  }
  func.func @transform_1(%arg0: i32) -> (i32, i32) {
    %c0_i32 = arith.constant 0 : i32
    %c0_i32_0 = arith.constant 0 : i32
    %c0_i32_1 = arith.constant 0 : i32
    return %c0_i32, %c0_i32_0 : i32, i32
  }
  func.func @transform_2(%arg0: i32) -> (i32, i32) {
    %c0_i32 = arith.constant 0 : i32
    %c0_i32_0 = arith.constant 0 : i32
    return %arg0, %c0_i32 : i32, i32
  }
}

</mosaic_0001>

<llo_original>
// kernel: ssg_dynamics_fw.1
$region0: #{ssg_dynamics_fw.1}
  #allocation0 [shape = 'u32[]', space=smem, size = 0x4, offset = 0x4, fixed_abs, tag = 'smem constant byte address 0x4 - core index']
  #allocation1 [shape = 'u32[72,128]{1,0:T(1,128)}', space=vmem, size = 0x9000, scoped, tag = 'internal scratch']
  %s0 = inlined_call_operand.vmem [shape: f32[64,8], index: 0, kind: input, shape index: {}]
  %s1 = inlined_call_operand.hbm [shape: f32[48,768], index: 1, kind: input, shape index: {}]
  %s2 = inlined_call_operand.vmem [shape: f32[64,128], index: 2, kind: output, shape index: {}]
  %s3 = sld [smem:[#allocation0]]
  $region45: #{ssg_dynamics_fw.1} parent=0
    _
  %s5 = ssub.s32 1, %s3
  %s6 = scalar_select 0, %s5, %s3
  $region1: #{ssg_dynamics_fw.1} parent=0
    #allocation2 [shape = 'u8[147456]{0}', space=vmem, size = 0x24000, scoped, tag = 'input window, operand 1, single buffered']
    #allocation3 [shape = 's32[2]{0}', space=sflag, size = 0x8, scoped, tag = 'scoped memory for ssg_dynamics_fw.1']
    %7 = vsyncpa [#allocation3], 0
    loop: start=0, step=1, limit=4
    $region2: #{ssg_dynamics_fw.1} parent=1 // loop_pre_header
      _
    $region3: #{ssg_dynamics_fw.1} parent=1 // loop_header
      %s9 = sphi 0, %s13
      %p10 = scmp.ge.s32.totalorder %s9, 4
      %s19 = sphi 0, %s21
      %s22 = sphi 0, %s19
      %s23 = sphi 0, %s22
      %s39 = sphi 0, %s23
      %s43 = sphi 0, %s43
      %s45 = sphi 0, %s43
      %s46 = sphi 0, %s45
      %s60 = sphi 0, %s46
      %s66 = sphi 0, %s68
      %s69 = sphi 0, %s66
      %s70 = sphi 0, %s69
      %s86 = sphi 0, %s70
    $region4: #{ssg_dynamics_fw.1} parent=1 // loop_header_branch
      %12 = sbr.rel (%p10) target = $region8
    $region5: #{ssg_dynamics_fw.1} parent=1 // loop_body
      %s14 = ssub.s32 %s9, 1
      %s15 = ssub.s32 %s9, 2
      %s16 = sadd.s32 %s9, 1
      %s17 = ssub.s32 %s9, %s16
      %p18 = scmp.eq.s32.totalorder %s17, 0
      %s20 = sadd.s32 %s19, 1
      %s21 = scalar_select %p18, %s19, %s20
      %p24 = pneg %p18
      %p25 = scmp.eq.s32.totalorder %s9, 1
      %p26 = por %p24, %p25
      %p27 = scmp.ne.s32.totalorder %s19, %s22
      %p28 = scmp.eq.s32.totalorder %s9, 0
      %p29 = por %p27, %p28
      %p30 = scmp.ne.s32.totalorder %s19, %s22
      %p31 = scmp.eq.s32.totalorder %s14, 1
      %p32 = por %p30, %p31
      %p33 = scmp.ne.s32.totalorder %s22, %s23
      %p34 = scmp.eq.s32.totalorder %s14, 0
      %p35 = por %p33, %p34
      %p36 = scmp.ne.s32.totalorder %s22, %s23
      %p37 = scmp.eq.s32.totalorder %s15, 1
      %p38 = por %p36, %p37
      %p40 = scmp.ne.s32.totalorder %s23, %s39
      %p41 = scmp.eq.s32.totalorder %s15, 0
      %p42 = por %p40, %p41
      %s44 = sadd.s32 %s43, 1
      %p47 = scmp.eq.s32.totalorder %s9, 1
      %p48 = scmp.ne.s32.totalorder %s43, %s45
      %p49 = scmp.eq.s32.totalorder %s9, 0
      %p50 = por %p48, %p49
      %p51 = scmp.ne.s32.totalorder %s43, %s45
      %p52 = scmp.eq.s32.totalorder %s14, 1
      %p53 = por %p51, %p52
      %p54 = scmp.ne.s32.totalorder %s45, %s46
      %p55 = scmp.eq.s32.totalorder %s14, 0
      %p56 = por %p54, %p55
      %p57 = scmp.ne.s32.totalorder %s45, %s46
      %p58 = scmp.eq.s32.totalorder %s15, 1
      %p59 = por %p57, %p58
      %p61 = scmp.ne.s32.totalorder %s46, %s60
      %p62 = scmp.eq.s32.totalorder %s15, 0
      %p63 = por %p61, %p62
      %s64 = ssub.s32 %s9, %s16
      %p65 = scmp.eq.s32.totalorder %s64, 0
      %s67 = sadd.s32 %s66, 1
      %s68 = scalar_select %p65, %s66, %s67
      %p71 = pneg %p65
      %p72 = scmp.eq.s32.totalorder %s9, 1
      %p73 = por %p71, %p72
      %p74 = scmp.ne.s32.totalorder %s66, %s69
      %p75 = scmp.eq.s32.totalorder %s9, 0
      %p76 = por %p74, %p75
      %p77 = scmp.ne.s32.totalorder %s66, %s69
      %p78 = scmp.eq.s32.totalorder %s14, 1
      %p79 = por %p77, %p78
      %p80 = scmp.ne.s32.totalorder %s69, %s70
      %p81 = scmp.eq.s32.totalorder %s14, 0
      %p82 = por %p80, %p81
      %p83 = scmp.ne.s32.totalorder %s69, %s70
      %p84 = scmp.eq.s32.totalorder %s15, 1
      %p85 = por %p83, %p84
      %p87 = scmp.ne.s32.totalorder %s70, %s86
      %p88 = scmp.eq.s32.totalorder %s15, 0
      %p89 = por %p87, %p88
      %p90 = scmp.le.s32.totalorder 1, %s9
      %p91 = scmp.lt.s32.totalorder %s9, 3
      %p92 = pnand %p90, %p91
      %p93 = pneg %p92
      // Predicated region
      $region9: #{ssg_dynamics_fw.1} parent=5 // pred_check
        _
      $region10: #{ssg_dynamics_fw.1} parent=5 // pred_check_branch
        %95 = sbr.rel (%p92) target = $region12
      $region11: #{ssg_dynamics_fw.1} parent=5 // pred_region
        %s96 = ssub.s32 %s9, 1
        // Predicated region
        $region13: #{ssg_dynamics_fw.1} parent=11 // pred_check
          %p97 = pneg %p56
        $region14: #{ssg_dynamics_fw.1} parent=11 // pred_check_branch
          %99 = sbr.rel (%p97) target = $region16
        $region15: #{ssg_dynamics_fw.1} parent=11 // pred_region
          %101 = vsyncadd [#allocation3], 0
          %s102 = sshll.u32 %s1, 4
          %s103 = int_to_ptr.hbm [resolvable:$true] %s102
          %s104 = sshll.u32 [#allocation2], 4
          %s105 = int_to_ptr.vmem [resolvable:$true] %s104
          %110 = dma.hbm_to_vmem [thread:$0]  %s103, 4608, %s105, [#allocation3], 768, 768, 48
        $region16: #{ssg_dynamics_fw.1} parent=11 // pred_fallthru
          _
      $region12: #{ssg_dynamics_fw.1} parent=5 // pred_fallthru
        _
      %p111 = scmp.lt.s32.totalorder %s9, 2
      // Predicated region
      $region17: #{ssg_dynamics_fw.1} parent=5 // pred_check
        %p112 = pneg %p111
      $region18: #{ssg_dynamics_fw.1} parent=5 // pred_check_branch
        %114 = sbr.rel (%p112) target = $region20
      $region19: #{ssg_dynamics_fw.1} parent=5 // pred_region
        // Predicated region
        $region21: #{ssg_dynamics_fw.1} parent=19 // pred_check
          %p115 = pneg %p29
        $region22: #{ssg_dynamics_fw.1} parent=19 // pred_check_branch
          %117 = sbr.rel (%p115) target = $region24
        $region23: #{ssg_dynamics_fw.1} parent=19 // pred_region
          %s118 = smul.u32 4, %s9
          %p119 = scmp.lt.s32.totalorder %s118, 7
          %s120 = scalar_select %p119, %s118, 7
          %s121 = smul.addr %s120, 8
          %s122 = scalar_lea.vmem %s0, %s121
          %s123 = smul.u32 4, %s9
        $region24: #{ssg_dynamics_fw.1} parent=19 // pred_fallthru
          _
      $region20: #{ssg_dynamics_fw.1} parent=5 // pred_fallthru
        _
      %p124 = scmp.le.s32.totalorder 1, %s9
      %p125 = scmp.lt.s32.totalorder %s9, 3
      %p126 = pnand %p124, %p125
      %p127 = pneg %p126
      // Predicated region
      $region25: #{ssg_dynamics_fw.1} parent=5 // pred_check
        _
      $region26: #{ssg_dynamics_fw.1} parent=5 // pred_check_branch
        %129 = sbr.rel (%p126) target = $region28
      $region27: #{ssg_dynamics_fw.1} parent=5 // pred_region
        %s130 = ssub.s32 %s9, 1
        // Predicated region
        $region29: #{ssg_dynamics_fw.1} parent=27 // pred_check
          %p131 = pneg %p56
        $region30: #{ssg_dynamics_fw.1} parent=27 // pred_check_branch
          %133 = sbr.rel (%p131) target = $region32
        $region31: #{ssg_dynamics_fw.1} parent=27 // pred_region
          %135 = dma.done [#allocation3], 4608
        $region32: #{ssg_dynamics_fw.1} parent=27 // pred_fallthru
          _
        %s136 = smul.u32 4, %s14
        %p137 = scmp.lt.s32.totalorder %s136, 7
        %s138 = scalar_select %p137, %s136, 7
        %s139 = smul.addr %s138, 8
        %s140 = scalar_lea.vmem %s0, %s139
        %p141 = pneg %p35
        %p142 = pneg %p32
        %p143 = pneg %p56
        %p144 = pneg %p53
        %p145 = pneg %p82
        %p146 = pneg %p79
        %s147 = smul.u32 4, %s14
        %p148 = scmp.lt.s32.totalorder %s147, 7
        %s149 = scalar_select %p148, %s147, 7
        %s150 = smul.addr %s149, 8
        %s151 = scalar_lea.vmem %s2, %s150
        %s152 = smul.u32 4, %s14
        %p153 = scmp.lt.s32.totalorder %s152, 7
        %s154 = scalar_select %p153, %s152, 7
        %s155 = smul.addr %s154, 8
        %s156 = scalar_lea.vmem %s0, %s155
        %s157 = smul.u32 4, %s14
        %s158 = smul.u32 4, %s14
        %p159 = scmp.lt.s32.totalorder %s158, 7
        %s160 = scalar_select %p159, %s158, 7
        %s161 = smul.addr %s160, 8
        %s162 = scalar_lea.vmem %s2, %s161
        %s163 = smul.u32 4, %s14
        %v164 = vld [vmem:[%s156] sm:$0xff]
        %v165 = vld [vmem:[%s156 + $0x8] sm:$0xff]
        %v166 = vld [vmem:[%s156 + $0x10] sm:$0xff]
        %v167 = vld [vmem:[%s156 + $0x18] sm:$0xff]
        %v168 = vld [vmem:[#allocation2] sm:$0xff]
        %v169 = vld [vmem:[#allocation2 + $0x30] sm:$0xff]
        %v170 = vld [vmem:[#allocation2 + $0x60] sm:$0xff]
        %v171 = vld [vmem:[#allocation2 + $0x90] sm:$0xff]
        %v172 = vld [vmem:[#allocation2 + $0x8] sm:$0xff]
        %v173 = vld [vmem:[#allocation2 + $0x38] sm:$0xff]
        %v174 = vld [vmem:[#allocation2 + $0x68] sm:$0xff]
        %v175 = vld [vmem:[#allocation2 + $0x98] sm:$0xff]
        %v176 = vld [vmem:[#allocation2 + $0x10] sm:$0xff]
        %v177 = vld [vmem:[#allocation2 + $0x40] sm:$0xff]
        %v178 = vld [vmem:[#allocation2 + $0x70] sm:$0xff]
        %v179 = vld [vmem:[#allocation2 + $0xa0] sm:$0xff]
        %v180 = vld [vmem:[#allocation2 + $0x18] sm:$0xff]
        %v181 = vld [vmem:[#allocation2 + $0x48] sm:$0xff]
        %v182 = vld [vmem:[#allocation2 + $0x78] sm:$0xff]
        %v183 = vld [vmem:[#allocation2 + $0xa8] sm:$0xff]
        %v184 = vld [vmem:[#allocation2 + $0x20] sm:$0xff]
        %v185 = vld [vmem:[#allocation2 + $0x50] sm:$0xff]
        %v186 = vld [vmem:[#allocation2 + $0x80] sm:$0xff]
        %v187 = vld [vmem:[#allocation2 + $0xb0] sm:$0xff]
        %v188 = vld [vmem:[#allocation2 + $0x28] sm:$0xff]
        %v189 = vld [vmem:[#allocation2 + $0x58] sm:$0xff]
        %v190 = vld [vmem:[#allocation2 + $0x88] sm:$0xff]
        %v191 = vld [vmem:[#allocation2 + $0xb8] sm:$0xff]
        %v192 = vld [vmem:[#allocation2 + $0xc0] sm:$0xf]
        %v193 = vld [vmem:[#allocation2 + $0xc8] sm:$0xf0]
        %v194 = vld [vmem:[#allocation2 + $0xf0] ss:$0 sm:$0xff]
        %v195 = vld [vmem:[#allocation2 + $0xf1] ss:$0 sm:$0xff]
        %v196 = vld [vmem:[#allocation2 + $0xf2] ss:$0 sm:$0xff]
        %v197 = vld [vmem:[#allocation2 + $0xf3] ss:$0 sm:$0xff]
        %v198 = vld [vmem:[#allocation2 + $0xf4] ss:$0 sm:$0xff]
        %v199 = vld [vmem:[#allocation2 + $0xf5] ss:$0 sm:$0xff]
        %v200 = vld [vmem:[#allocation2 + $0xf6] ss:$0 sm:$0xff]
        %205 = vrot.lane.b32.xlu0 %v164, 124
        %v206 = vpop.permute.xlu0 %205
        %207 = vrot.lane.b32.xlu0 %v165, 124
        %v208 = vpop.permute.xlu0 %207
        %209 = vrot.lane.b32.xlu0 %v166, 124
        %v210 = vpop.permute.xlu0 %209
        %211 = vrot.lane.b32.xlu0 %v167, 124
        %v212 = vpop.permute.xlu0 %211
        %vm213 = vcmask 31744
        %v214 = vsel %vm213, %v206, 0
        %v216 = vsel %vm213, %v208, 0
        %v218 = vsel %vm213, %v210, 0
        %v220 = vsel %vm213, %v212, 0
        %vm222 = vcmask 1043456
        %v224 = vsel %vm222, %v192, 0
        %226 = vmatpush.msra.mxu0 0.0
        %227 = vmatpush.msra.mxu0 0.0
        %228 = vmatpush.msra.mxu0 0.0
        %229 = vmatpush.msra.mxu0 0.0
        %230 = vmatpush.msra.mxu0 0.0
        %231 = vmatpush.msra.mxu0 0.0
        %232 = vmatpush.msra.mxu0 0.0
        %233 = vmatpush.msra.mxu0 0.0
        %234 = vmatpush.msra.mxu0 0.0
        %235 = vmatpush.msra.mxu0 0.0
        %236 = vmatpush.msra.mxu0 0.0
        %237 = vmatpush.msra.mxu0 0.0
        %238 = vmatpush.msra.mxu0 0.0
        %239 = vmatpush.msra.mxu0 0.0
        %240 = vmatpush.msra.mxu0 0.0
        %241 = vmatpush.msra.mxu0 %v224
        %242 = vmatmul.f32.gmra.mxu0 %v214
        %v243 = vpop.f32.mrf.mxu0
        %v244 = vadd.f32 %v194, %v243
        %245 = vmatmul.f32.gmra.mxu0 %v216
        %v246 = vpop.f32.mrf.mxu0
        %v247 = vadd.f32 %v194, %v246
        %248 = vmatmul.f32.gmra.mxu0 %v218
        %v249 = vpop.f32.mrf.mxu0
        %v250 = vadd.f32 %v194, %v249
        %251 = vmatmul.f32.gmra.mxu0 %v220
        %v252 = vpop.f32.mrf.mxu0
        %v253 = vadd.f32 %v194, %v252
        %254 = vdwg.mxu0
        %v255 = vmax.f32 %v244, 0.0
        %v256 = vmax.f32 %v247, 0.0
        %v257 = vmax.f32 %v250, 0.0
        %v258 = vmax.f32 %v253, 0.0
        %vm259 = vcmask 261120
        %v261 = vsel %vm259, %v255, 0
        %v264 = vsel %vm259, %v256, 0
        %v267 = vsel %vm259, %v257, 0
        %v270 = vsel %vm259, %v258, 0
        %272 = vmatpush.msra.mxu0 0.0
        %273 = vmatpush.msra.mxu0 0.0
        %274 = vmatpush.msra.mxu0 0.0
        %275 = vmatpush.msra.mxu0 0.0
        %276 = vmatpush.msra.mxu0 0.0
        %277 = vmatpush.msra.mxu0 0.0
        %278 = vmatpush.msra.mxu0 0.0
        %279 = vmatpush.msra.mxu0 0.0
        %280 = vmatpush.msra.mxu0 0.0
        %281 = vmatpush.msra.mxu0 0.0
        %282 = vmatpush.msra.mxu0 0.0
        %283 = vmatpush.msra.mxu0 0.0
        %284 = vmatpush.msra.mxu0 %v171
        %285 = vmatpush.msra.mxu0 %v170
        %286 = vmatpush.msra.mxu0 %v169
        %287 = vmatpush.msra.mxu0 %v168
        %288 = vmatmul.f32.gmra.mxu0 %v261
        %v289 = vpop.f32.mrf.mxu0
        %v290 = vadd.f32 %v195, %v289
        %291 = vmatmul.f32.gmra.mxu0 %v264
        %v292 = vpop.f32.mrf.mxu0
        %v293 = vadd.f32 %v195, %v292
        %294 = vmatmul.f32.gmra.mxu0 %v267
        %v295 = vpop.f32.mrf.mxu0
        %v296 = vadd.f32 %v195, %v295
        %297 = vmatmul.f32.gmra.mxu0 %v270
        %v298 = vpop.f32.mrf.mxu0
        %v299 = vadd.f32 %v195, %v298
        %300 = vdwg.mxu0
        %v301 = vmax.f32 %v290, 0.0
        %v302 = vmax.f32 %v293, 0.0
        %v303 = vmax.f32 %v296, 0.0
        %v304 = vmax.f32 %v299, 0.0
        %v306 = vsel %vm259, %v301, 0
        %v309 = vsel %vm259, %v302, 0
        %v312 = vsel %vm259, %v303, 0
        %v315 = vsel %vm259, %v304, 0
        %317 = vmatpush.msra.mxu0 0.0
        %318 = vmatpush.msra.mxu0 0.0
        %319 = vmatpush.msra.mxu0 0.0
        %320 = vmatpush.msra.mxu0 0.0
        %321 = vmatpush.msra.mxu0 0.0
        %322 = vmatpush.msra.mxu0 0.0
        %323 = vmatpush.msra.mxu0 0.0
        %324 = vmatpush.msra.mxu0 0.0
        %325 = vmatpush.msra.mxu0 0.0
        %326 = vmatpush.msra.mxu0 0.0
        %327 = vmatpush.msra.mxu0 0.0
        %328 = vmatpush.msra.mxu0 0.0
        %329 = vmatpush.msra.mxu0 %v191
        %330 = vmatpush.msra.mxu0 %v190
        %331 = vmatpush.msra.mxu0 %v189
        %332 = vmatpush.msra.mxu0 %v188
        %333 = vmatmul.f32.gmra.mxu0 %v306
        %v334 = vpop.f32.mrf.mxu0
        %v335 = vadd.f32 %v197, %v334
        %336 = vmatmul.f32.gmra.mxu0 %v309
        %v337 = vpop.f32.mrf.mxu0
        %v338 = vadd.f32 %v197, %v337
        %339 = vmatmul.f32.gmra.mxu0 %v312
        %v340 = vpop.f32.mrf.mxu0
        %v341 = vadd.f32 %v197, %v340
        %342 = vmatmul.f32.gmra.mxu0 %v315
        %v343 = vpop.f32.mrf.mxu0
        %v344 = vadd.f32 %v197, %v343
        %345 = vdwg.mxu0
        %v347 = vrot.slane %v193, 4
        %v348 = vsel %vm213, %v164, 0
        %v350 = vsel %vm213, %v165, 0
        %v352 = vsel %vm213, %v166, 0
        %v354 = vsel %vm213, %v167, 0
        %v357 = vsel %vm213, %v335, 0
        %v360 = vsel %vm213, %v338, 0
        %v363 = vsel %vm213, %v341, 0
        %v366 = vsel %vm213, %v344, 0
        %v368 = vsel %vm222, %v347, 0
        %370 = vmatpush.msra.mxu0 0.0
        %371 = vmatpush.msra.mxu0 0.0
        %372 = vmatpush.msra.mxu0 0.0
        %373 = vmatpush.msra.mxu0 0.0
        %374 = vmatpush.msra.mxu0 0.0
        %375 = vmatpush.msra.mxu0 0.0
        %376 = vmatpush.msra.mxu0 0.0
        %377 = vmatpush.msra.mxu0 0.0
        %378 = vmatpush.msra.mxu0 0.0
        %379 = vmatpush.msra.mxu0 0.0
        %380 = vmatpush.msra.mxu0 0.0
        %381 = vmatpush.msra.mxu0 0.0
        %382 = vmatpush.msra.mxu0 0.0
        %383 = vmatpush.msra.mxu0 0.0
        %384 = vmatpush.msra.mxu0 0.0
        %385 = vmatpush.msra.mxu0 %v368
        %386 = vmatmul.f32.gmra.mxu0 %v348
        %v387 = vpop.f32.mrf.mxu0
        %v388 = vadd.f32 0.0, %v387
        %389 = vmatmul.f32.gmra.mxu0 %v350
        %v390 = vpop.f32.mrf.mxu0
        %v391 = vadd.f32 0.0, %v390
        %392 = vmatmul.f32.gmra.mxu0 %v352
        %v393 = vpop.f32.mrf.mxu0
        %v394 = vadd.f32 0.0, %v393
        %395 = vmatmul.f32.gmra.mxu0 %v354
        %v396 = vpop.f32.mrf.mxu0
        %v397 = vadd.f32 0.0, %v396
        %398 = vmatmul.f32.gmra.mxu0 %v357
        %v399 = vpop.f32.mrf.mxu0
        %v400 = vadd.f32 0.0, %v399
        %401 = vmatmul.f32.gmra.mxu0 %v360
        %v402 = vpop.f32.mrf.mxu0
        %v403 = vadd.f32 0.0, %v402
        %404 = vmatmul.f32.gmra.mxu0 %v363
        %v405 = vpop.f32.mrf.mxu0
        %v406 = vadd.f32 0.0, %v405
        %407 = vmatmul.f32.gmra.mxu0 %v366
        %v408 = vpop.f32.mrf.mxu0
        %v409 = vadd.f32 0.0, %v408
        %410 = vdwg.mxu0
        %415 = vrot.lane.b32.xlu0 %v244, 96
        %v416 = vpop.permute.xlu0 %415
        %417 = vrot.lane.b32.xlu0 %v247, 96
        %v418 = vpop.permute.xlu0 %417
        %419 = vrot.lane.b32.xlu0 %v250, 96
        %v420 = vpop.permute.xlu0 %419
        %421 = vrot.lane.b32.xlu0 %v253, 96
        %v422 = vpop.permute.xlu0 %421
        %v427 = vadd.f32 %v388, %v416
        %v428 = vadd.f32 %v391, %v418
        %v429 = vadd.f32 %v394, %v420
        %v430 = vadd.f32 %v397, %v422
        %v431 = vadd.f32 %v400, %v416
        %v432 = vadd.f32 %v403, %v418
        %v433 = vadd.f32 %v406, %v420
        %v434 = vadd.f32 %v409, %v422
        %v435 = vmax.f32 %v427, 0.0
        %v436 = vmax.f32 %v428, 0.0
        %v437 = vmax.f32 %v429, 0.0
        %v438 = vmax.f32 %v430, 0.0
        %v439 = vmax.f32 %v431, 0.0
        %v440 = vmax.f32 %v432, 0.0
        %v441 = vmax.f32 %v433, 0.0
        %v442 = vmax.f32 %v434, 0.0
        %447 = vrot.lane.b32.xlu0 %v435, 96
        %v448 = vpop.permute.xlu0 %447
        %449 = vrot.lane.b32.xlu0 %v436, 96
        %v450 = vpop.permute.xlu0 %449
        %451 = vrot.lane.b32.xlu0 %v437, 96
        %v452 = vpop.permute.xlu0 %451
        %453 = vrot.lane.b32.xlu0 %v438, 96
        %v454 = vpop.permute.xlu0 %453
        %v455 = vsel %vm259, %v435, 0
        %v457 = vsel %vm259, %v436, 0
        %v459 = vsel %vm259, %v437, 0
        %v461 = vsel %vm259, %v438, 0
        %v464 = vsel %vm259, %v439, 0
        %v467 = vsel %vm259, %v440, 0
        %v470 = vsel %vm259, %v441, 0
        %v473 = vsel %vm259, %v442, 0
        %v475 = vsel %vm259, %v448, 0
        %v477 = vsel %vm259, %v450, 0
        %v479 = vsel %vm259, %v452, 0
        %v481 = vsel %vm259, %v454, 0
        %483 = vmatpush.msra.mxu0 0.0
        %484 = vmatpush.msra.mxu0 0.0
        %485 = vmatpush.msra.mxu0 0.0
        %486 = vmatpush.msra.mxu0 0.0
        %487 = vmatpush.msra.mxu0 0.0
        %488 = vmatpush.msra.mxu0 0.0
        %489 = vmatpush.msra.mxu0 0.0
        %490 = vmatpush.msra.mxu0 0.0
        %491 = vmatpush.msra.mxu0 0.0
        %492 = vmatpush.msra.mxu0 0.0
        %493 = vmatpush.msra.mxu0 0.0
        %494 = vmatpush.msra.mxu0 0.0
        %495 = vmatpush.msra.mxu0 %v175
        %496 = vmatpush.msra.mxu0 %v174
        %497 = vmatpush.msra.mxu0 %v173
        %498 = vmatpush.msra.mxu0 %v172
        %499 = vmatmul.f32.gmra.mxu0 %v455
        %v500 = vpop.f32.mrf.mxu0
        %v501 = vadd.f32 %v196, %v500
        %502 = vmatmul.f32.gmra.mxu0 %v457
        %v503 = vpop.f32.mrf.mxu0
        %v504 = vadd.f32 %v196, %v503
        %505 = vmatmul.f32.gmra.mxu0 %v459
        %v506 = vpop.f32.mrf.mxu0
        %v507 = vadd.f32 %v196, %v506
        %508 = vmatmul.f32.gmra.mxu0 %v461
        %v509 = vpop.f32.mrf.mxu0
        %v510 = vadd.f32 %v196, %v509
        %511 = vmatmul.f32.gmra.mxu0 %v464
        %v512 = vpop.f32.mrf.mxu0
        %v513 = vadd.f32 %v196, %v512
        %514 = vmatmul.f32.gmra.mxu0 %v467
        %v515 = vpop.f32.mrf.mxu0
        %v516 = vadd.f32 %v196, %v515
        %517 = vmatmul.f32.gmra.mxu0 %v470
        %v518 = vpop.f32.mrf.mxu0
        %v519 = vadd.f32 %v196, %v518
        %520 = vmatmul.f32.gmra.mxu0 %v473
        %v521 = vpop.f32.mrf.mxu0
        %v522 = vadd.f32 %v196, %v521
        %523 = vmatmul.f32.gmra.mxu0 %v475
        %v524 = vpop.f32.mrf.mxu0
        %v525 = vadd.f32 %v196, %v524
        %526 = vmatmul.f32.gmra.mxu0 %v477
        %v527 = vpop.f32.mrf.mxu0
        %v528 = vadd.f32 %v196, %v527
        %529 = vmatmul.f32.gmra.mxu0 %v479
        %v530 = vpop.f32.mrf.mxu0
        %v531 = vadd.f32 %v196, %v530
        %532 = vmatmul.f32.gmra.mxu0 %v481
        %v533 = vpop.f32.mrf.mxu0
        %v534 = vadd.f32 %v196, %v533
        %535 = vdwg.mxu0
        %v536 = vmax.f32 %v501, 0.0
        %v537 = vmax.f32 %v504, 0.0
        %v538 = vmax.f32 %v507, 0.0
        %v539 = vmax.f32 %v510, 0.0
        %v540 = vmax.f32 %v513, 0.0
        %v541 = vmax.f32 %v516, 0.0
        %v542 = vmax.f32 %v519, 0.0
        %v543 = vmax.f32 %v522, 0.0
        %v544 = vmax.f32 %v525, 0.0
        %v545 = vmax.f32 %v528, 0.0
        %v546 = vmax.f32 %v531, 0.0
        %v547 = vmax.f32 %v534, 0.0
        %552 = vrot.lane.b32.xlu0 %v544, 96
        %v553 = vpop.permute.xlu0 %552
        %554 = vrot.lane.b32.xlu0 %v545, 96
        %v555 = vpop.permute.xlu0 %554
        %556 = vrot.lane.b32.xlu0 %v546, 96
        %v557 = vpop.permute.xlu0 %556
        %558 = vrot.lane.b32.xlu0 %v547, 96
        %v559 = vpop.permute.xlu0 %558
        %v561 = vsel %vm259, %v536, 0
        %v564 = vsel %vm259, %v537, 0
        %v567 = vsel %vm259, %v538, 0
        %v570 = vsel %vm259, %v539, 0
        %v573 = vsel %vm259, %v540, 0
        %v576 = vsel %vm259, %v541, 0
        %v579 = vsel %vm259, %v542, 0
        %v582 = vsel %vm259, %v543, 0
        %v584 = vsel %vm259, %v553, 0
        %v586 = vsel %vm259, %v555, 0
        %v588 = vsel %vm259, %v557, 0
        %v590 = vsel %vm259, %v559, 0
        %592 = vmatpush.msra.mxu0 0.0
        %593 = vmatpush.msra.mxu0 0.0
        %594 = vmatpush.msra.mxu0 0.0
        %595 = vmatpush.msra.mxu0 0.0
        %596 = vmatpush.msra.mxu0 0.0
        %597 = vmatpush.msra.mxu0 0.0
        %598 = vmatpush.msra.mxu0 0.0
        %599 = vmatpush.msra.mxu0 0.0
        %600 = vmatpush.msra.mxu0 0.0
        %601 = vmatpush.msra.mxu0 0.0
        %602 = vmatpush.msra.mxu0 0.0
        %603 = vmatpush.msra.mxu0 0.0
        %604 = vmatpush.msra.mxu0 %v179
        %605 = vmatpush.msra.mxu0 %v178
        %606 = vmatpush.msra.mxu0 %v177
        %607 = vmatpush.msra.mxu0 %v176
        %608 = vmatmul.f32.gmra.mxu0 %v561
        %v609 = vpop.f32.mrf.mxu0
        %v610 = vadd.f32 0.0, %v609
        %611 = vmatmul.f32.gmra.mxu0 %v564
        %v612 = vpop.f32.mrf.mxu0
        %v613 = vadd.f32 0.0, %v612
        %614 = vmatmul.f32.gmra.mxu0 %v567
        %v615 = vpop.f32.mrf.mxu0
        %v616 = vadd.f32 0.0, %v615
        %617 = vmatmul.f32.gmra.mxu0 %v570
        %v618 = vpop.f32.mrf.mxu0
        %v619 = vadd.f32 0.0, %v618
        %620 = vmatmul.f32.gmra.mxu0 %v573
        %v621 = vpop.f32.mrf.mxu0
        %v622 = vadd.f32 0.0, %v621
        %623 = vmatmul.f32.gmra.mxu0 %v576
        %v624 = vpop.f32.mrf.mxu0
        %v625 = vadd.f32 0.0, %v624
        %626 = vmatmul.f32.gmra.mxu0 %v579
        %v627 = vpop.f32.mrf.mxu0
        %v628 = vadd.f32 0.0, %v627
        %629 = vmatmul.f32.gmra.mxu0 %v582
        %v630 = vpop.f32.mrf.mxu0
        %v631 = vadd.f32 0.0, %v630
        %632 = vmatmul.f32.gmra.mxu0 %v584
        %v633 = vpop.f32.mrf.mxu0
        %v634 = vadd.f32 0.0, %v633
        %635 = vmatmul.f32.gmra.mxu0 %v586
        %v636 = vpop.f32.mrf.mxu0
        %v637 = vadd.f32 0.0, %v636
        %638 = vmatmul.f32.gmra.mxu0 %v588
        %v639 = vpop.f32.mrf.mxu0
        %v640 = vadd.f32 0.0, %v639
        %641 = vmatmul.f32.gmra.mxu0 %v590
        %v642 = vpop.f32.mrf.mxu0
        %v643 = vadd.f32 0.0, %v642
        %644 = vdwg.mxu0
        %v645 = vadd.f32 %v610, %v198
        %v646 = vadd.f32 %v613, %v198
        %v647 = vadd.f32 %v616, %v198
        %v648 = vadd.f32 %v619, %v198
        %v649 = vadd.f32 %v622, %v198
        %v650 = vadd.f32 %v625, %v198
        %v651 = vadd.f32 %v628, %v198
        %v652 = vadd.f32 %v631, %v198
        %v653 = vsub.f32 %v645, %v649
        %v654 = vsub.f32 %v646, %v650
        %v655 = vsub.f32 %v647, %v651
        %v656 = vsub.f32 %v648, %v652
        %658 = vrot.lane.b32.xlu0 %v199, 4
        %v659 = vpop.permute.xlu0 %658
        %v661 = vadd.f32 %v634, %v659
        %v662 = vadd.f32 %v637, %v659
        %v663 = vadd.f32 %v640, %v659
        %v664 = vadd.f32 %v643, %v659
        %vm665 = vcmp.gt.f32.partialorder %v525, 0.0
        %vm666 = vcmp.gt.f32.partialorder %v528, 0.0
        %vm667 = vcmp.gt.f32.partialorder %v531, 0.0
        %vm668 = vcmp.gt.f32.partialorder %v534, 0.0
        %670 = vrot.lane.b32.xlu0 %v200, 32
        %v671 = vpop.permute.xlu0 %670
        %v673 = vsel %vm665, %v671, 0.0
        %v674 = vsel %vm666, %v671, 0.0
        %v675 = vsel %vm667, %v671, 0.0
        %v676 = vsel %vm668, %v671, 0.0
        %vm677 = vcmp.gt.f32.partialorder %v427, 0.0
        %vm678 = vcmp.gt.f32.partialorder %v428, 0.0
        %vm679 = vcmp.gt.f32.partialorder %v429, 0.0
        %vm680 = vcmp.gt.f32.partialorder %v430, 0.0
        %685 = vrot.lane.b32.xlu0 %v673, 96
        %v686 = vpop.permute.xlu0 %685
        %687 = vrot.lane.b32.xlu0 %v674, 96
        %v688 = vpop.permute.xlu0 %687
        %689 = vrot.lane.b32.xlu0 %v675, 96
        %v690 = vpop.permute.xlu0 %689
        %691 = vrot.lane.b32.xlu0 %v676, 96
        %v692 = vpop.permute.xlu0 %691
        %v693 = vsel %vm259, %v686, 0
        %v695 = vsel %vm259, %v688, 0
        %v697 = vsel %vm259, %v690, 0
        %v699 = vsel %vm259, %v692, 0
        %701 = vmatpush.msra.mxu0 0.0
        %702 = vmatpush.msra.mxu0 0.0
        %703 = vmatpush.msra.mxu0 0.0
        %704 = vmatpush.msra.mxu0 0.0
        %705 = vmatpush.msra.mxu0 0.0
        %706 = vmatpush.msra.mxu0 0.0
        %707 = vmatpush.msra.mxu0 0.0
        %708 = vmatpush.msra.mxu0 0.0
        %709 = vmatpush.msra.mxu0 0.0
        %710 = vmatpush.msra.mxu0 0.0
        %711 = vmatpush.msra.mxu0 0.0
        %712 = vmatpush.msra.mxu0 0.0
        %713 = vmatpush.msra.mxu0 %v183
        %714 = vmatpush.msra.mxu0 %v182
        %715 = vmatpush.msra.mxu0 %v181
        %716 = vmatpush.msra.mxu0 %v180
        %717 = vmatmul.f32.gmra.mxu0 %v693
        %v718 = vpop.f32.mrf.mxu0
        %v719 = vadd.f32 0.0, %v718
        %720 = vmatmul.f32.gmra.mxu0 %v695
        %v721 = vpop.f32.mrf.mxu0
        %v722 = vadd.f32 0.0, %v721
        %723 = vmatmul.f32.gmra.mxu0 %v697
        %v724 = vpop.f32.mrf.mxu0
        %v725 = vadd.f32 0.0, %v724
        %726 = vmatmul.f32.gmra.mxu0 %v699
        %v727 = vpop.f32.mrf.mxu0
        %v728 = vadd.f32 0.0, %v727
        %729 = vdwg.mxu0
        %734 = vrot.lane.b32.xlu0 %v719, 32
        %v735 = vpop.permute.xlu0 %734
        %736 = vrot.lane.b32.xlu0 %v722, 32
        %v737 = vpop.permute.xlu0 %736
        %738 = vrot.lane.b32.xlu0 %v725, 32
        %v739 = vpop.permute.xlu0 %738
        %740 = vrot.lane.b32.xlu0 %v728, 32
        %v741 = vpop.permute.xlu0 %740
        %v746 = vsel %vm677, %v735, 0.0
        %v747 = vsel %vm678, %v737, 0.0
        %v748 = vsel %vm679, %v739, 0.0
        %v749 = vsel %vm680, %v741, 0.0
        %754 = vrot.lane.b32.xlu0 %v746, 96
        %v755 = vpop.permute.xlu0 %754
        %756 = vrot.lane.b32.xlu0 %v747, 96
        %v757 = vpop.permute.xlu0 %756
        %758 = vrot.lane.b32.xlu0 %v748, 96
        %v759 = vpop.permute.xlu0 %758
        %760 = vrot.lane.b32.xlu0 %v749, 96
        %v761 = vpop.permute.xlu0 %760
        %v762 = vsel %vm259, %v755, 0
        %v764 = vsel %vm259, %v757, 0
        %v766 = vsel %vm259, %v759, 0
        %v768 = vsel %vm259, %v761, 0
        %770 = vmatpush.msra.mxu0 0.0
        %771 = vmatpush.msra.mxu0 0.0
        %772 = vmatpush.msra.mxu0 0.0
        %773 = vmatpush.msra.mxu0 0.0
        %774 = vmatpush.msra.mxu0 0.0
        %775 = vmatpush.msra.mxu0 0.0
        %776 = vmatpush.msra.mxu0 0.0
        %777 = vmatpush.msra.mxu0 0.0
        %778 = vmatpush.msra.mxu0 0.0
        %779 = vmatpush.msra.mxu0 0.0
        %780 = vmatpush.msra.mxu0 0.0
        %781 = vmatpush.msra.mxu0 0.0
        %782 = vmatpush.msra.mxu0 %v187
        %783 = vmatpush.msra.mxu0 %v186
        %784 = vmatpush.msra.mxu0 %v185
        %785 = vmatpush.msra.mxu0 %v184
        %786 = vmatmul.f32.gmra.mxu0 %v762
        %v787 = vpop.f32.mrf.mxu0
        %v788 = vadd.f32 0.0, %v787
        %789 = vmatmul.f32.gmra.mxu0 %v764
        %v790 = vpop.f32.mrf.mxu0
        %v791 = vadd.f32 0.0, %v790
        %792 = vmatmul.f32.gmra.mxu0 %v766
        %v793 = vpop.f32.mrf.mxu0
        %v794 = vadd.f32 0.0, %v793
        %795 = vmatmul.f32.gmra.mxu0 %v768
        %v796 = vpop.f32.mrf.mxu0
        %v797 = vadd.f32 0.0, %v796
        %798 = vdwg.mxu0
        %v799 = vsub.f32 %v164, %v335
        %v800 = vsub.f32 %v165, %v338
        %v801 = vsub.f32 %v166, %v341
        %v802 = vsub.f32 %v167, %v344
        %v803 = vmul.f32 %v799, %v799
        %v804 = vmul.f32 %v800, %v800
        %v805 = vmul.f32 %v801, %v801
        %v806 = vmul.f32 %v802, %v802
        %v807 = vsel %vm213, %v803, 0.0
        %808 = vadd.xlane.f32.xlu0 %v807
        %v809 = vpop.xlane.xlu0 %808
        %v810 = vsel %vm213, %v804, 0.0
        %811 = vadd.xlane.f32.xlu0 %v810
        %v812 = vpop.xlane.xlu0 %811
        %v813 = vsel %vm213, %v805, 0.0
        %814 = vadd.xlane.f32.xlu0 %v813
        %v815 = vpop.xlane.xlu0 %814
        %v816 = vsel %vm213, %v806, 0.0
        %817 = vadd.xlane.f32.xlu0 %v816
        %v818 = vpop.xlane.xlu0 %817
        %v819 = vmul.f32 %v809, 0.1
        %v820 = vmul.f32 %v812, 0.1
        %v821 = vmul.f32 %v815, 0.1
        %v822 = vmul.f32 %v818, 0.1
        %v823 = vmul.f32 %v788, %v653
        %v824 = vmul.f32 %v791, %v654
        %v825 = vmul.f32 %v794, %v655
        %v826 = vmul.f32 %v797, %v656
        %v827 = vsel %vm213, %v823, 0.0
        %828 = vadd.xlane.f32.xlu0 %v827
        %v829 = vpop.xlane.xlu0 %828
        %v830 = vsel %vm213, %v824, 0.0
        %831 = vadd.xlane.f32.xlu0 %v830
        %v832 = vpop.xlane.xlu0 %831
        %v833 = vsel %vm213, %v825, 0.0
        %834 = vadd.xlane.f32.xlu0 %v833
        %v835 = vpop.xlane.xlu0 %834
        %v836 = vsel %vm213, %v826, 0.0
        %837 = vadd.xlane.f32.xlu0 %v836
        %v838 = vpop.xlane.xlu0 %837
        %v839 = vadd.f32 %v829, %v819
        %v840 = vadd.f32 %v832, %v820
        %v841 = vadd.f32 %v835, %v821
        %v842 = vadd.f32 %v838, %v822
        %v843 = vmul.f32 %v788, %v788
        %v844 = vmul.f32 %v791, %v791
        %v845 = vmul.f32 %v794, %v794
        %v846 = vmul.f32 %v797, %v797
        %v847 = vsel %vm213, %v843, 0.0
        %848 = vadd.xlane.f32.xlu0 %v847
        %v849 = vpop.xlane.xlu0 %848
        %v850 = vsel %vm213, %v844, 0.0
        %851 = vadd.xlane.f32.xlu0 %v850
        %v852 = vpop.xlane.xlu0 %851
        %v853 = vsel %vm213, %v845, 0.0
        %854 = vadd.xlane.f32.xlu0 %v853
        %v855 = vpop.xlane.xlu0 %854
        %v856 = vsel %vm213, %v846, 0.0
        %857 = vadd.xlane.f32.xlu0 %v856
        %v858 = vpop.xlane.xlu0 %857
        %v859 = vadd.f32 %v849, 0.0001
        %v860 = vadd.f32 %v852, 0.0001
        %v861 = vadd.f32 %v855, 0.0001
        %v862 = vadd.f32 %v858, 0.0001
        %v863 = vrcp.pop %v859
        %v864 = vrcp.pop %v860
        %v865 = vrcp.pop %v861
        %v866 = vrcp.pop %v862
        %v867 = vmul.f32 %v859, %v863
        %v868 = vmul.f32 %v860, %v864
        %v869 = vmul.f32 %v861, %v865
        %v870 = vmul.f32 %v862, %v866
        %v871 = vsub.f32 2.0, %v867
        %v872 = vsub.f32 2.0, %v868
        %v873 = vsub.f32 2.0, %v869
        %v874 = vsub.f32 2.0, %v870
        %v875 = vmul.f32 %v863, %v871
        %v876 = vmul.f32 %v864, %v872
        %v877 = vmul.f32 %v865, %v873
        %v878 = vmul.f32 %v866, %v874
        %v879 = vmul.f32 %v839, %v875
        %v880 = vmul.f32 %v840, %v876
        %v881 = vmul.f32 %v841, %v877
        %v882 = vmul.f32 %v842, %v878
        %v883 = vmax.f32 %v879, 0.0
        %v884 = vmax.f32 %v880, 0.0
        %v885 = vmax.f32 %v881, 0.0
        %v886 = vmax.f32 %v882, 0.0
        %v887 = vmul.f32 %v883, %v788
        %v888 = vmul.f32 %v884, %v791
        %v889 = vmul.f32 %v885, %v794
        %v890 = vmul.f32 %v886, %v797
        %v891 = vsub.f32 %v653, %v887
        %v892 = vsub.f32 %v654, %v888
        %v893 = vsub.f32 %v655, %v889
        %v894 = vsub.f32 %v656, %v890
        %895 = vrot.lane.b32.xlu0 %v335, 4
        %v896 = vpop.permute.xlu0 %895
        %897 = vrot.lane.b32.xlu0 %v338, 4
        %v898 = vpop.permute.xlu0 %897
        %899 = vrot.lane.b32.xlu0 %v341, 4
        %v900 = vpop.permute.xlu0 %899
        %901 = vrot.lane.b32.xlu0 %v344, 4
        %v902 = vpop.permute.xlu0 %901
        %911 = vrot.lane.b32.xlu0 %v661, 4
        %v912 = vpop.permute.xlu0 %911
        %913 = vrot.lane.b32.xlu0 %v662, 4
        %v914 = vpop.permute.xlu0 %913
        %915 = vrot.lane.b32.xlu0 %v663, 4
        %v916 = vpop.permute.xlu0 %915
        %917 = vrot.lane.b32.xlu0 %v664, 4
        %v918 = vpop.permute.xlu0 %917
        %v923 = vsel %vm213, %v891, %v896
        %v924 = vsel %vm213, %v892, %v898
        %v925 = vsel %vm213, %v893, %v900
        %v926 = vsel %vm213, %v894, %v902
        %vm927 = vcmask 64512
        %v928 = vsel %vm927, %v923, %v912
        %v929 = vsel %vm927, %v924, %v914
        %v930 = vsel %vm927, %v925, %v916
        %v931 = vsel %vm927, %v926, %v918
        %vm932 = vcmask 72704
        %v933 = vsel %vm932, %v928, 0.0
        %v934 = vsel %vm932, %v929, 0.0
        %v935 = vsel %vm932, %v930, 0.0
        %v936 = vsel %vm932, %v931, 0.0
        %937 = vst [vmem:[%s162] sm:$0xff] %v933
        %938 = vst [vmem:[%s162 + $0x8] sm:$0xff] %v934
        %939 = vst [vmem:[%s162 + $0x10] sm:$0xff] %v935
        %940 = vst [vmem:[%s162 + $0x18] sm:$0xff] %v936
        %s941 = smul.u32 4, %s14
        %p942 = scmp.lt.s32.totalorder %s941, 7
        %s943 = scalar_select %p942, %s941, 7
        %s944 = smul.addr %s943, 8
        %s945 = scalar_lea.vmem %s2, %s944
        // Predicated region
        $region33: #{ssg_dynamics_fw.1} parent=27 // pred_check
          %p946 = pneg %p79
        $region34: #{ssg_dynamics_fw.1} parent=27 // pred_check_branch
          %948 = sbr.rel (%p946) target = $region36
        $region35: #{ssg_dynamics_fw.1} parent=27 // pred_region
          %s949 = smul.u32 4, %s14
        $region36: #{ssg_dynamics_fw.1} parent=27 // pred_fallthru
          _
      $region28: #{ssg_dynamics_fw.1} parent=5 // pred_fallthru
        _
      %p950 = scmp.le.s32.totalorder 2, %s9
      // Predicated region
      $region37: #{ssg_dynamics_fw.1} parent=5 // pred_check
        %p951 = pneg %p950
      $region38: #{ssg_dynamics_fw.1} parent=5 // pred_check_branch
        %953 = sbr.rel (%p951) target = $region40
      $region39: #{ssg_dynamics_fw.1} parent=5 // pred_region
        %s954 = ssub.s32 %s9, 2
        // Predicated region
        $region41: #{ssg_dynamics_fw.1} parent=39 // pred_check
          %p955 = pneg %p85
        $region42: #{ssg_dynamics_fw.1} parent=39 // pred_check_branch
          %957 = sbr.rel (%p955) target = $region44
        $region43: #{ssg_dynamics_fw.1} parent=39 // pred_region
          %s958 = smul.u32 4, %s15
          %p959 = scmp.lt.s32.totalorder %s958, 7
          %s960 = scalar_select %p959, %s958, 7
          %s961 = smul.addr %s960, 8
          %s962 = scalar_lea.vmem %s2, %s961
        $region44: #{ssg_dynamics_fw.1} parent=39 // pred_fallthru
          _
      $region40: #{ssg_dynamics_fw.1} parent=5 // pred_fallthru
        _
    $region6: #{ssg_dynamics_fw.1} parent=1 // loop_footer
      %s13 = sadd.s32 1, %s9
    $region7: #{ssg_dynamics_fw.1} parent=1 // loop_footer_branch
      %8 = sbr.rel target = $region3
    $region8: #{ssg_dynamics_fw.1} parent=1 // loop_exit
      _
    %963 = vsyncpa [#allocation3], 1
    %s964 = scalar_lea.sflag [#allocation3], 1
    %965 = vsyncpa %s964, 1

</llo_original>
